<compile_context>
chip_gen: v6e
topology: v6e:2x2x1
jax: 0.10.0
libtpu: 0.0.40
codegen_flags: <defaults>
</compile_context>

<pallas_src>
import functools

import jax
import jax.numpy as jnp
from jax import lax
from jax.experimental import pallas as pl
from jax.experimental.pallas import tpu as pltpu

BN_EPS = 1e-5


def _double_conv_kernel(x_ref, wb1_ref, s1_ref, b1_ref, wb2_ref, s2_ref, b2_ref,
                        o_ref, *, NB, H):
    """Both conv+BN+ReLU stages fused; NB batch images per grid step.

    x_ref:   (NB, H, W*Cin)      bf16 NHWC activation, (W, C) flattened to lanes
    wb1_ref: (3, W*Cin,  W*Cout) bf16 banded stage-1 weights (one per ky tap,
                                 kx taps + channel contraction + kx padding folded in)
    s1_ref, b1_ref: (1, W*Cout)  f32 folded BN scale / (conv bias + BN) bias
    wb2_ref: (3, W*Cout, W*Cout) bf16 banded stage-2 weights
    s2_ref, b2_ref: (1, W*Cout)  f32
    o_ref:   (NB, H, W*Cout)     f32 lane-dense output slab
    """
    K1 = x_ref.shape[-1]
    K2 = o_ref.shape[-1]
    M = NB * H

    # ---- stage 1: vertical taps as row-shifted operands (1-row zero halo) ---
    x = x_ref[...]                                                 # (NB, H, K1)
    z1 = jnp.zeros((NB, 1, K1), x.dtype)
    x_prev = jnp.concatenate([z1, x[:, :H - 1, :]], axis=1).reshape(M, K1)
    x_next = jnp.concatenate([x[:, 1:, :], z1], axis=1).reshape(M, K1)
    x_mid = x.reshape(M, K1)

    # 3 MXU matmuls, back-to-back, f32 accumulation.
    acc = jnp.dot(x_prev, wb1_ref[0], preferred_element_type=jnp.float32)
    acc = acc + jnp.dot(x_mid, wb1_ref[1], preferred_element_type=jnp.float32)
    acc = acc + jnp.dot(x_next, wb1_ref[2], preferred_element_type=jnp.float32)
    # folded BatchNorm (eval mode) + ReLU epilogue in f32
    y1 = jnp.maximum(acc * s1_ref[...] + b1_ref[...], 0.0)

    # ---- stage 2: intermediate never leaves the kernel ----------------------
    h = y1.astype(jnp.bfloat16).reshape(NB, H, K2)
    z2 = jnp.zeros((NB, 1, K2), jnp.bfloat16)
    h_prev = jnp.concatenate([z2, h[:, :H - 1, :]], axis=1).reshape(M, K2)
    h_next = jnp.concatenate([h[:, 1:, :], z2], axis=1).reshape(M, K2)
    h_mid = h.reshape(M, K2)

    acc2 = jnp.dot(h_prev, wb2_ref[0], preferred_element_type=jnp.float32)
    acc2 = acc2 + jnp.dot(h_mid, wb2_ref[1], preferred_element_type=jnp.float32)
    acc2 = acc2 + jnp.dot(h_next, wb2_ref[2], preferred_element_type=jnp.float32)
    y2 = jnp.maximum(acc2 * s2_ref[...] + b2_ref[...], 0.0)

    o_ref[...] = y2.reshape(NB, H, K2).astype(o_ref.dtype)


def band_weights(w_oihw, W, dtype):
    """Fold the 3 kx taps + channel contraction + kx zero-padding of a 3x3 conv
    into 3 banded matrices (one per ky tap).

    Returns (3, W*Cin, W*Cout) with
      out[ky][w_in*Cin + ci, w_out*Cout + co] = w[co, ci, ky, w_in - w_out + 1]
    for -1 <= w_in - w_out <= 1, else 0.  (Weight prep only; runs once in XLA.)
    """
    Cout, Cin = w_oihw.shape[0], w_oihw.shape[1]
    wT = jnp.transpose(w_oihw, (2, 3, 1, 0))          # (3, 3, Cin, Cout) [ky,kx,ci,co]
    win = jnp.arange(W)
    wout = jnp.arange(W)
    kx = win[:, None] - wout[None, :] + 1              # (W_in, W_out)
    valid = (kx >= 0) & (kx <= 2)
    kx_c = jnp.clip(kx, 0, 2)
    g = wT[:, kx_c, :, :]                              # (3, W_in, W_out, Cin, Cout)
    g = jnp.where(valid[None, :, :, None, None], g, 0.0)
    g = jnp.transpose(g, (0, 1, 3, 2, 4))              # (3, W_in, Cin, W_out, Cout)
    return g.reshape(3, W * Cin, W * Cout).astype(dtype)


def fold_bn(conv_bias, gamma, beta, run_mean, run_var):
    """Fold conv bias + BatchNorm (eval) into per-channel scale / bias."""
    scale = gamma / jnp.sqrt(run_var + BN_EPS)
    bias = (conv_bias - run_mean) * scale + beta
    return scale, bias


def double_conv_forward(x_nchw, params):
    """DoubleConv forward. x_nchw: (N, Cin, H, W) like PyTorch; returns NCHW."""
    (w1, b1, g1, be1, rm1, rv1, w2, b2, g2, be2, rm2, rv2) = params
    N, Cin, H, W = x_nchw.shape
    Cout = w1.shape[0]

    # NHWC with (W, C) flattened into lanes; bf16 for the MXU operands.
    x_flat = jnp.transpose(x_nchw, (0, 2, 3, 1)).reshape(N, H, W * Cin)
    x_flat = x_flat.astype(jnp.bfloat16)

    s1, bb1 = fold_bn(b1, g1, be1, rm1, rv1)
    s2, bb2 = fold_bn(b2, g2, be2, rm2, rv2)
    wb1 = band_weights(w1, W, jnp.bfloat16)            # (3, W*Cin,  W*Cout)
    wb2 = band_weights(w2, W, jnp.bfloat16)            # (3, W*Cout, W*Cout)
    s1t = jnp.tile(s1, W).reshape(1, W * Cout).astype(jnp.float32)
    b1t = jnp.tile(bb1, W).reshape(1, W * Cout).astype(jnp.float32)
    s2t = jnp.tile(s2, W).reshape(1, W * Cout).astype(jnp.float32)
    b2t = jnp.tile(bb2, W).reshape(1, W * Cout).astype(jnp.float32)

    K1 = W * Cin
    K2 = W * Cout
    NB = N   # whole batch per grid step at this size -> single grid step, M = N*H
    kern = functools.partial(_double_conv_kernel, NB=NB, H=H)

    out_flat = pl.pallas_call(
        kern,
        out_shape=jax.ShapeDtypeStruct((N, H, W * Cout), jnp.float32),
        grid=(N // NB,),
        in_specs=[
            pl.BlockSpec((NB, H, K1), lambda i: (i, 0, 0)),
            pl.BlockSpec((3, K1, K2), lambda i: (0, 0, 0)),
            pl.BlockSpec((1, K2), lambda i: (0, 0)),
            pl.BlockSpec((1, K2), lambda i: (0, 0)),
            pl.BlockSpec((3, K2, K2), lambda i: (0, 0, 0)),
            pl.BlockSpec((1, K2), lambda i: (0, 0)),
            pl.BlockSpec((1, K2), lambda i: (0, 0)),
        ],
        out_specs=pl.BlockSpec((NB, H, K2), lambda i: (i, 0, 0)),
        compiler_params=pltpu.CompilerParams(
            dimension_semantics=("parallel",),
            vmem_limit_bytes=32 * 1024 * 1024),
    )(x_flat, wb1, s1t, b1t, wb2, s2t, b2t)

    out = out_flat.reshape(N, H, W, Cout)
    return jnp.transpose(out, (0, 3, 1, 2))            # -> NCHW


def reference_forward(x_nchw, params):
    """Pure-JAX f32 NCHW reference mirroring the PyTorch module (eval-mode BN)."""
    (w1, b1, g1, be1, rm1, rv1, w2, b2, g2, be2, rm2, rv2) = params

    def stage(x, w, b, g, be, rm, rv):
        y = lax.conv_general_dilated(
            x, w, window_strides=(1, 1), padding="SAME",
            dimension_numbers=("NCHW", "OIHW", "NCHW"))
        y = y + b[None, :, None, None]
        y = (y - rm[None, :, None, None]) / jnp.sqrt(rv + BN_EPS)[None, :, None, None]
        y = y * g[None, :, None, None] + be[None, :, None, None]
        return jnp.maximum(y, 0.0)

    y = stage(x_nchw, w1, b1, g1, be1, rm1, rv1)
    y = stage(y, w2, b2, g2, be2, rm2, rv2)
    return y


def init_params(key, in_channels, out_channels):
    ks = jax.random.split(key, 12)
    w1 = 0.1 * jax.random.normal(ks[0], (out_channels, in_channels, 3, 3), jnp.float32)
    b1 = 0.05 * jax.random.normal(ks[1], (out_channels,), jnp.float32)
    g1 = 1.0 + 0.1 * jax.random.normal(ks[2], (out_channels,), jnp.float32)
    be1 = 0.05 * jax.random.normal(ks[3], (out_channels,), jnp.float32)
    rm1 = 0.02 * jax.random.normal(ks[4], (out_channels,), jnp.float32)
    rv1 = 1.0 + 0.1 * jnp.abs(jax.random.normal(ks[5], (out_channels,), jnp.float32))

    w2 = 0.1 * jax.random.normal(ks[6], (out_channels, out_channels, 3, 3), jnp.float32)
    b2 = 0.05 * jax.random.normal(ks[7], (out_channels,), jnp.float32)
    g2 = 1.0 + 0.1 * jax.random.normal(ks[8], (out_channels,), jnp.float32)
    be2 = 0.05 * jax.random.normal(ks[9], (out_channels,), jnp.float32)
    rm2 = 0.02 * jax.random.normal(ks[10], (out_channels,), jnp.float32)
    rv2 = 1.0 + 0.1 * jnp.abs(jax.random.normal(ks[11], (out_channels,), jnp.float32))
    return (w1, b1, g1, be1, rm1, rv1, w2, b2, g2, be2, rm2, rv2)


if __name__ == "__main__":
    key = jax.random.PRNGKey(0)
    kx, kp = jax.random.split(key)

    N, Cin, Cout, H, W = 2, 4, 8, 16, 16
    x = jax.random.normal(kx, (N, Cin, H, W), jnp.float32)   # PyTorch-style NCHW
    params = init_params(kp, Cin, Cout)

    out = jax.block_until_ready(double_conv_forward(x, params))
    ref = jax.block_until_ready(reference_forward(x, params))

    assert out.shape == (N, Cout, H, W), out.shape
    err = float(jnp.max(jnp.abs(out - ref)))
    # bf16 MXU operands with f32 accumulation -> loosen tolerance vs f32 ref.
    assert jnp.allclose(out, ref, atol=5e-2, rtol=5e-2), err
    print("KERNEL_OK")
</pallas_src>

<mosaic_0001>
module attributes {stable_mosaic.version = 11 : i64} {
  func.func @_double_conv_kernel(%arg0: i32, %arg1: memref<2x16x64xbf16, #tpu.memory_space<vmem>>, %arg2: memref<3x64x128xbf16, #tpu.memory_space<vmem>>, %arg3: memref<1x128xf32, #tpu.memory_space<vmem>>, %arg4: memref<1x128xf32, #tpu.memory_space<vmem>>, %arg5: memref<3x128x128xbf16, #tpu.memory_space<vmem>>, %arg6: memref<1x128xf32, #tpu.memory_space<vmem>>, %arg7: memref<1x128xf32, #tpu.memory_space<vmem>>, %arg8: memref<2x16x128xf32, #tpu.memory_space<vmem>>) attributes {dimension_semantics = [#tpu.dimension_semantics<parallel>], iteration_bounds = array<i64: 1>, scalar_prefetch = 0 : i64, scratch_operands = 0 : i64, tpu.core_type = #tpu.core_type<tc>, window_params = [{transform_indices = @transform_0, window_bounds = array<i64: 2, 16, 64>}, {pipeline_mode = #tpu.pipeline_mode<synchronous>, transform_indices = @transform_1, window_bounds = array<i64: 3, 64, 128>}, {pipeline_mode = #tpu.pipeline_mode<synchronous>, transform_indices = @transform_2, window_bounds = array<i64: 1, 128>}, {pipeline_mode = #tpu.pipeline_mode<synchronous>, transform_indices = @transform_3, window_bounds = array<i64: 1, 128>}, {pipeline_mode = #tpu.pipeline_mode<synchronous>, transform_indices = @transform_4, window_bounds = array<i64: 3, 128, 128>}, {pipeline_mode = #tpu.pipeline_mode<synchronous>, transform_indices = @transform_5, window_bounds = array<i64: 1, 128>}, {pipeline_mode = #tpu.pipeline_mode<synchronous>, transform_indices = @transform_6, window_bounds = array<i64: 1, 128>}, {transform_indices = @transform_7, window_bounds = array<i64: 2, 16, 128>}]} {
    %c0 = arith.constant 0 : index
    %c0_0 = arith.constant 0 : index
    %c0_1 = arith.constant 0 : index
    %0 = vector.load %arg1[%c0, %c0_0, %c0_1] : memref<2x16x64xbf16, #tpu.memory_space<vmem>>, vector<2x16x64xbf16>
    %cst = arith.constant 0.000000e+00 : bf16
    %1 = vector.broadcast %cst : bf16 to vector<2x1x64xbf16>
    %2 = vector.extract_strided_slice %0 {offsets = [0, 0, 0], sizes = [2, 15, 64], strides = [1, 1, 1]} : vector<2x16x64xbf16> to vector<2x15x64xbf16>
    %3 = tpu.concatenate %1, %2 in 1 : vector<2x1x64xbf16>, vector<2x15x64xbf16> -> vector<2x16x64xbf16>
    %4 = vector.shape_cast %3 : vector<2x16x64xbf16> to vector<32x64xbf16>
    %5 = vector.extract_strided_slice %0 {offsets = [0, 1, 0], sizes = [2, 15, 64], strides = [1, 1, 1]} : vector<2x16x64xbf16> to vector<2x15x64xbf16>
    %6 = tpu.concatenate %5, %1 in 1 : vector<2x15x64xbf16>, vector<2x1x64xbf16> -> vector<2x16x64xbf16>
    %7 = vector.shape_cast %6 : vector<2x16x64xbf16> to vector<32x64xbf16>
    %8 = vector.shape_cast %0 : vector<2x16x64xbf16> to vector<32x64xbf16>
    %c0_2 = arith.constant 0 : index
    %c0_3 = arith.constant 0 : index
    %c0_4 = arith.constant 0 : index
    %9 = vector.load %arg2[%c0_2, %c0_3, %c0_4] : memref<3x64x128xbf16, #tpu.memory_space<vmem>>, vector<1x64x128xbf16>
    %10 = vector.shape_cast %9 : vector<1x64x128xbf16> to vector<64x128xbf16>
    %cst_5 = arith.constant dense<0.000000e+00> : vector<32x128xf32>
    %11 = tpu.matmul %4, %10, %cst_5 {dimension_numbers = #tpu.dot_dimension_numbers<[1], [0], [0], [1], [0, 0, 1, 1], [], []>} : vector<32x64xbf16>, vector<64x128xbf16>, vector<32x128xf32> -> vector<32x128xf32>
    %c1 = arith.constant 1 : index
    %c0_6 = arith.constant 0 : index
    %c0_7 = arith.constant 0 : index
    %12 = vector.load %arg2[%c1, %c0_6, %c0_7] : memref<3x64x128xbf16, #tpu.memory_space<vmem>>, vector<1x64x128xbf16>
    %13 = vector.shape_cast %12 : vector<1x64x128xbf16> to vector<64x128xbf16>
    %cst_8 = arith.constant dense<0.000000e+00> : vector<32x128xf32>
    %14 = tpu.matmul %8, %13, %cst_8 {dimension_numbers = #tpu.dot_dimension_numbers<[1], [0], [0], [1], [0, 0, 1, 1], [], []>} : vector<32x64xbf16>, vector<64x128xbf16>, vector<32x128xf32> -> vector<32x128xf32>
    %15 = arith.addf %11, %14 : vector<32x128xf32>
    %c2 = arith.constant 2 : index
    %c0_9 = arith.constant 0 : index
    %c0_10 = arith.constant 0 : index
    %16 = vector.load %arg2[%c2, %c0_9, %c0_10] : memref<3x64x128xbf16, #tpu.memory_space<vmem>>, vector<1x64x128xbf16>
    %17 = vector.shape_cast %16 : vector<1x64x128xbf16> to vector<64x128xbf16>
    %cst_11 = arith.constant dense<0.000000e+00> : vector<32x128xf32>
    %18 = tpu.matmul %7, %17, %cst_11 {dimension_numbers = #tpu.dot_dimension_numbers<[1], [0], [0], [1], [0, 0, 1, 1], [], []>} : vector<32x64xbf16>, vector<64x128xbf16>, vector<32x128xf32> -> vector<32x128xf32>
    %19 = arith.addf %15, %18 : vector<32x128xf32>
    %c0_12 = arith.constant 0 : index
    %c0_13 = arith.constant 0 : index
    %20 = vector.load %arg3[%c0_12, %c0_13] : memref<1x128xf32, #tpu.memory_space<vmem>>, vector<1x128xf32>
    %21 = vector.broadcast %20 : vector<1x128xf32> to vector<32x128xf32>
    %22 = arith.mulf %19, %21 : vector<32x128xf32>
    %c0_14 = arith.constant 0 : index
    %c0_15 = arith.constant 0 : index
    %23 = vector.load %arg4[%c0_14, %c0_15] : memref<1x128xf32, #tpu.memory_space<vmem>>, vector<1x128xf32>
    %24 = vector.broadcast %23 : vector<1x128xf32> to vector<32x128xf32>
    %25 = arith.addf %22, %24 : vector<32x128xf32>
    %cst_16 = arith.constant 0.000000e+00 : f32
    %26 = vector.broadcast %cst_16 : f32 to vector<32x128xf32>
    %27 = arith.maximumf %25, %26 : vector<32x128xf32>
    %28 = arith.truncf %27 : vector<32x128xf32> to vector<32x128xbf16>
    %29 = vector.shape_cast %28 : vector<32x128xbf16> to vector<2x16x128xbf16>
    %cst_17 = arith.constant 0.000000e+00 : bf16
    %30 = vector.broadcast %cst_17 : bf16 to vector<2x1x128xbf16>
    %31 = vector.extract_strided_slice %29 {offsets = [0, 0, 0], sizes = [2, 15, 128], strides = [1, 1, 1]} : vector<2x16x128xbf16> to vector<2x15x128xbf16>
    %32 = tpu.concatenate %30, %31 in 1 : vector<2x1x128xbf16>, vector<2x15x128xbf16> -> vector<2x16x128xbf16>
    %33 = vector.shape_cast %32 : vector<2x16x128xbf16> to vector<32x128xbf16>
    %34 = vector.extract_strided_slice %29 {offsets = [0, 1, 0], sizes = [2, 15, 128], strides = [1, 1, 1]} : vector<2x16x128xbf16> to vector<2x15x128xbf16>
    %35 = tpu.concatenate %34, %30 in 1 : vector<2x15x128xbf16>, vector<2x1x128xbf16> -> vector<2x16x128xbf16>
    %36 = vector.shape_cast %35 : vector<2x16x128xbf16> to vector<32x128xbf16>
    %37 = vector.shape_cast %29 : vector<2x16x128xbf16> to vector<32x128xbf16>
    %c0_18 = arith.constant 0 : index
    %c0_19 = arith.constant 0 : index
    %c0_20 = arith.constant 0 : index
    %38 = vector.load %arg5[%c0_18, %c0_19, %c0_20] : memref<3x128x128xbf16, #tpu.memory_space<vmem>>, vector<1x128x128xbf16>
    %39 = vector.shape_cast %38 : vector<1x128x128xbf16> to vector<128x128xbf16>
    %cst_21 = arith.constant dense<0.000000e+00> : vector<32x128xf32>
    %40 = tpu.matmul %33, %39, %cst_21 {dimension_numbers = #tpu.dot_dimension_numbers<[1], [0], [0], [1], [0, 0, 1, 1], [], []>} : vector<32x128xbf16>, vector<128x128xbf16>, vector<32x128xf32> -> vector<32x128xf32>
    %c1_22 = arith.constant 1 : index
    %c0_23 = arith.constant 0 : index
    %c0_24 = arith.constant 0 : index
    %41 = vector.load %arg5[%c1_22, %c0_23, %c0_24] : memref<3x128x128xbf16, #tpu.memory_space<vmem>>, vector<1x128x128xbf16>
    %42 = vector.shape_cast %41 : vector<1x128x128xbf16> to vector<128x128xbf16>
    %cst_25 = arith.constant dense<0.000000e+00> : vector<32x128xf32>
    %43 = tpu.matmul %37, %42, %cst_25 {dimension_numbers = #tpu.dot_dimension_numbers<[1], [0], [0], [1], [0, 0, 1, 1], [], []>} : vector<32x128xbf16>, vector<128x128xbf16>, vector<32x128xf32> -> vector<32x128xf32>
    %44 = arith.addf %40, %43 : vector<32x128xf32>
    %c2_26 = arith.constant 2 : index
    %c0_27 = arith.constant 0 : index
    %c0_28 = arith.constant 0 : index
    %45 = vector.load %arg5[%c2_26, %c0_27, %c0_28] : memref<3x128x128xbf16, #tpu.memory_space<vmem>>, vector<1x128x128xbf16>
    %46 = vector.shape_cast %45 : vector<1x128x128xbf16> to vector<128x128xbf16>
    %cst_29 = arith.constant dense<0.000000e+00> : vector<32x128xf32>
    %47 = tpu.matmul %36, %46, %cst_29 {dimension_numbers = #tpu.dot_dimension_numbers<[1], [0], [0], [1], [0, 0, 1, 1], [], []>} : vector<32x128xbf16>, vector<128x128xbf16>, vector<32x128xf32> -> vector<32x128xf32>
    %48 = arith.addf %44, %47 : vector<32x128xf32>
    %c0_30 = arith.constant 0 : index
    %c0_31 = arith.constant 0 : index
    %49 = vector.load %arg6[%c0_30, %c0_31] : memref<1x128xf32, #tpu.memory_space<vmem>>, vector<1x128xf32>
    %50 = vector.broadcast %49 : vector<1x128xf32> to vector<32x128xf32>
    %51 = arith.mulf %48, %50 : vector<32x128xf32>
    %c0_32 = arith.constant 0 : index
    %c0_33 = arith.constant 0 : index
    %52 = vector.load %arg7[%c0_32, %c0_33] : memref<1x128xf32, #tpu.memory_space<vmem>>, vector<1x128xf32>
    %53 = vector.broadcast %52 : vector<1x128xf32> to vector<32x128xf32>
    %54 = arith.addf %51, %53 : vector<32x128xf32>
    %cst_34 = arith.constant 0.000000e+00 : f32
    %55 = vector.broadcast %cst_34 : f32 to vector<32x128xf32>
    %56 = arith.maximumf %54, %55 : vector<32x128xf32>
    %57 = vector.shape_cast %56 : vector<32x128xf32> to vector<2x16x128xf32>
    %c0_35 = arith.constant 0 : index
    %c0_36 = arith.constant 0 : index
    %c0_37 = arith.constant 0 : index
    %58 = vector.load %arg8[%c0_35, %c0_36, %c0_37] : memref<2x16x128xf32, #tpu.memory_space<vmem>>, vector<2x16x128xf32>
    tpu.vector_store %arg8[%c0_35, %c0_36, %c0_37], %57 {strides = array<i32>} : memref<2x16x128xf32, #tpu.memory_space<vmem>>, vector<2x16x128xf32>,
    return
  }
  func.func @transform_0(%arg0: i32) -> (i32, i32, i32) {
    %c0_i32 = arith.constant 0 : i32
    %c0_i32_0 = arith.constant 0 : i32
    %c0_i32_1 = arith.constant 0 : i32
    return %arg0, %c0_i32, %c0_i32_0 : i32, i32, i32
  }
  func.func @transform_1(%arg0: i32) -> (i32, i32, i32) {
    %c0_i32 = arith.constant 0 : i32
    %c0_i32_0 = arith.constant 0 : i32
    %c0_i32_1 = arith.constant 0 : i32
    %c0_i32_2 = arith.constant 0 : i32
    return %c0_i32, %c0_i32_0, %c0_i32_1 : i32, i32, i32
  }
  func.func @transform_2(%arg0: i32) -> (i32, i32) {
    %c0_i32 = arith.constant 0 : i32
    %c0_i32_0 = arith.constant 0 : i32
    %c0_i32_1 = arith.constant 0 : i32
    return %c0_i32, %c0_i32_0 : i32, i32
  }
  func.func @transform_3(%arg0: i32) -> (i32, i32) {
    %c0_i32 = arith.constant 0 : i32
    %c0_i32_0 = arith.constant 0 : i32
    %c0_i32_1 = arith.constant 0 : i32
    return %c0_i32, %c0_i32_0 : i32, i32
  }
  func.func @transform_4(%arg0: i32) -> (i32, i32, i32) {
    %c0_i32 = arith.constant 0 : i32
    %c0_i32_0 = arith.constant 0 : i32
    %c0_i32_1 = arith.constant 0 : i32
    %c0_i32_2 = arith.constant 0 : i32
    return %c0_i32, %c0_i32_0, %c0_i32_1 : i32, i32, i32
  }
  func.func @transform_5(%arg0: i32) -> (i32, i32) {
    %c0_i32 = arith.constant 0 : i32
    %c0_i32_0 = arith.constant 0 : i32
    %c0_i32_1 = arith.constant 0 : i32
    return %c0_i32, %c0_i32_0 : i32, i32
  }
  func.func @transform_6(%arg0: i32) -> (i32, i32) {
    %c0_i32 = arith.constant 0 : i32
    %c0_i32_0 = arith.constant 0 : i32
    %c0_i32_1 = arith.constant 0 : i32
    return %c0_i32, %c0_i32_0 : i32, i32
  }
  func.func @transform_7(%arg0: i32) -> (i32, i32, i32) {
    %c0_i32 = arith.constant 0 : i32
    %c0_i32_0 = arith.constant 0 : i32
    %c0_i32_1 = arith.constant 0 : i32
    return %arg0, %c0_i32, %c0_i32_0 : i32, i32, i32
  }
}

</mosaic_0001>

<llo_original>
// kernel: tpu_custom_call.1
$region0: #{tpu_custom_call.1}
  #allocation0 [shape = 'u32[]', space=smem, size = 0x4, offset = 0x4, fixed_abs, tag = 'smem constant byte address 0x4 - core index']
  #allocation1 [shape = 'u32[144,128]{1,0:T(1,128)}', space=vmem, size = 0x12000, scoped, tag = 'internal scratch']
  %s0 = inlined_call_operand.hbm [shape: bf16[2,16,64], index: 0, kind: input, shape index: {}]
  %s1 = inlined_call_operand.hbm [shape: bf16[3,64,128], index: 1, kind: input, shape index: {}]
  %s2 = inlined_call_operand.vmem [shape: f32[1,128], index: 2, kind: input, shape index: {}]
  %s3 = inlined_call_operand.vmem [shape: f32[1,128], index: 3, kind: input, shape index: {}]
  %s4 = inlined_call_operand.hbm [shape: bf16[3,128,128], index: 4, kind: input, shape index: {}]
  %s5 = inlined_call_operand.vmem [shape: f32[1,128], index: 5, kind: input, shape index: {}]
  %s6 = inlined_call_operand.vmem [shape: f32[1,128], index: 6, kind: input, shape index: {}]
  %s7 = inlined_call_operand.hbm [shape: f32[2,16,128], index: 7, kind: output, shape index: {}]
  %s8 = sld [smem:[#allocation0]]
  $region50: #{tpu_custom_call.1} parent=0
    _
  %s10 = ssub.s32 1, %s8
  %s11 = scalar_select 0, %s10, %s8
  $region1: #{tpu_custom_call.1} parent=0
    #allocation2 [shape = 'u8[8192]{0}', space=vmem, size = 0x2000, scoped, tag = 'input window, operand 0, single buffered']
    #allocation3 [shape = 's32[1]{0}', space=sflag, size = 0x4, scoped, tag = 'scoped memory for tpu_custom_call.1']
    #allocation4 [shape = 's32[1]{0}', space=sflag, size = 0x4, scoped, tag = 'scoped memory for tpu_custom_call.1']
    #allocation5 [shape = 'u8[49152]{0}', space=vmem, size = 0xc000, scoped, tag = 'input window, operand 1, single buffered']
    #allocation6 [shape = 's32[1]{0}', space=sflag, size = 0x4, scoped, tag = 'scoped memory for tpu_custom_call.1']
    #allocation7 [shape = 'u8[98304]{0}', space=vmem, size = 0x18000, scoped, tag = 'input window, operand 4, single buffered']
    #allocation8 [shape = 'u8[16384]{0}', space=vmem, size = 0x4000, scoped, tag = 'output window, operand 0, single buffered']
    %12 = vsyncpa [#allocation3], 0
    %13 = vsyncpa [#allocation6], 0
    %14 = vsyncpa [#allocation4], 0
    // Predicated region
    $region2: #{tpu_custom_call.1} parent=1 // pred_check
      _
    $region3: #{tpu_custom_call.1} parent=1 // pred_check_branch
      %16 = sbr.rel (0) target = $region5
    $region4: #{tpu_custom_call.1} parent=1 // pred_region
      %s18 = ssub.s32 256, 256
      %19 = vsyncadd [#allocation3], %s18
      %s20 = sshll.u32 [#allocation2], 4
      %s21 = int_to_ptr.vmem [resolvable:$true] %s20
      %26 = dma.hbm_to_vmem [thread:$0]  %s0, 256, %s21, [#allocation3], 64, 64, 4
    $region5: #{tpu_custom_call.1} parent=1 // pred_fallthru
      _
    // Predicated region
    $region6: #{tpu_custom_call.1} parent=1 // pred_check
      _
    $region7: #{tpu_custom_call.1} parent=1 // pred_check_branch
      %28 = sbr.rel (0) target = $region9
    $region8: #{tpu_custom_call.1} parent=1 // pred_region
      %s30 = ssub.s32 1536, 1536
      %31 = vsyncadd [#allocation6], %s30
      %s32 = sshll.u32 [#allocation5], 4
      %s33 = int_to_ptr.vmem [resolvable:$true] %s32
      %38 = dma.hbm_to_vmem [thread:$0]  %s1, 1536, %s33, [#allocation6], 64, 64, 4
    $region9: #{tpu_custom_call.1} parent=1 // pred_fallthru
      _
    // Predicated region
    $region10: #{tpu_custom_call.1} parent=1 // pred_check
      _
    $region11: #{tpu_custom_call.1} parent=1 // pred_check_branch
      %40 = sbr.rel (0) target = $region13
    $region12: #{tpu_custom_call.1} parent=1 // pred_region
      _
    $region13: #{tpu_custom_call.1} parent=1 // pred_fallthru
      _
    // Predicated region
    $region14: #{tpu_custom_call.1} parent=1 // pred_check
      _
    $region15: #{tpu_custom_call.1} parent=1 // pred_check_branch
      %42 = sbr.rel (0) target = $region17
    $region16: #{tpu_custom_call.1} parent=1 // pred_region
      _
    $region17: #{tpu_custom_call.1} parent=1 // pred_fallthru
      _
    // Predicated region
    $region18: #{tpu_custom_call.1} parent=1 // pred_check
      _
    $region19: #{tpu_custom_call.1} parent=1 // pred_check_branch
      %44 = sbr.rel (0) target = $region21
    $region20: #{tpu_custom_call.1} parent=1 // pred_region
      %s46 = ssub.s32 3072, 3072
      %47 = vsyncadd [#allocation6], %s46
      %s48 = sshll.u32 [#allocation7], 4
      %s49 = int_to_ptr.vmem [resolvable:$true] %s48
      %54 = dma.hbm_to_vmem [thread:$0]  %s4, 3072, %s49, [#allocation6], 64, 64, 4
    $region21: #{tpu_custom_call.1} parent=1 // pred_fallthru
      _
    // Predicated region
    $region22: #{tpu_custom_call.1} parent=1 // pred_check
      _
    $region23: #{tpu_custom_call.1} parent=1 // pred_check_branch
      %56 = sbr.rel (0) target = $region25
    $region24: #{tpu_custom_call.1} parent=1 // pred_region
      _
    $region25: #{tpu_custom_call.1} parent=1 // pred_fallthru
      _
    // Predicated region
    $region26: #{tpu_custom_call.1} parent=1 // pred_check
      _
    $region27: #{tpu_custom_call.1} parent=1 // pred_check_branch
      %58 = sbr.rel (0) target = $region29
    $region28: #{tpu_custom_call.1} parent=1 // pred_region
      _
    $region29: #{tpu_custom_call.1} parent=1 // pred_fallthru
      _
    // Predicated region
    $region30: #{tpu_custom_call.1} parent=1 // pred_check
      _
    $region31: #{tpu_custom_call.1} parent=1 // pred_check_branch
      %60 = sbr.rel (0) target = $region33
    $region32: #{tpu_custom_call.1} parent=1 // pred_region
      %61 = dma.done [#allocation3], 256
    $region33: #{tpu_custom_call.1} parent=1 // pred_fallthru
      _
    // Predicated region
    $region34: #{tpu_custom_call.1} parent=1 // pred_check
      _
    $region35: #{tpu_custom_call.1} parent=1 // pred_check_branch
      %63 = sbr.rel (0) target = $region37
    $region36: #{tpu_custom_call.1} parent=1 // pred_region
      %64 = dma.done [#allocation6], 1536
    $region37: #{tpu_custom_call.1} parent=1 // pred_fallthru
      _
    // Predicated region
    $region38: #{tpu_custom_call.1} parent=1 // pred_check
      _
    $region39: #{tpu_custom_call.1} parent=1 // pred_check_branch
      %66 = sbr.rel (0) target = $region41
    $region40: #{tpu_custom_call.1} parent=1 // pred_region
      %67 = dma.done [#allocation6], 3072
    $region41: #{tpu_custom_call.1} parent=1 // pred_fallthru
      _
    %v69 = vld [vmem:[#allocation2] sm:$0xf]
    %v70 = vld [vmem:[#allocation2 + $0x4] sm:$0xf]
    %v71 = vld [vmem:[#allocation2 + $0x8] sm:$0xf]
    %v72 = vld [vmem:[#allocation2 + $0xc] sm:$0xf]
    %v77 = vunpack.c.l.b16 %v69
    %v78 = vunpack.c.l.b16 %v70
    %v79 = vunpack.c.l.b16 %v71
    %v80 = vunpack.c.l.b16 %v72
    %v81 = vpack.c.b16 %v78, %v77
    %v82 = vpack.c.b16 %v80, %v79
    %v84 = vshrl.u32 %v81, 16
    %v86 = vrot.slane %v84, 7
    %v87 = vshll.u32 %v81, 16
    %v89 = vor.u32 %v86, %v87
    %v91 = vshrl.u32 %v82, 16
    %v93 = vrot.slane %v91, 7
    %v94 = vshll.u32 %v82, 16
    %v96 = vor.u32 %v93, %v94
    %vm99 = vcmask 1040384
    %vm100 = vsmask.f32 256
    %vm101 = vmand %vm99, %vm100
    %v102 = vsel %vm101, 0, %v89
    %v103 = vsel %vm101, 0, %v96
    %v104 = vrot.slane %v87, 1
    %v105 = vor.u32 %v84, %v104
    %v106 = vrot.slane %v94, 1
    %v107 = vor.u32 %v91, %v106
    %vm110 = vcmask 1047552
    %vm111 = vsmask.f32 7424
    %vm112 = vmand %vm110, %vm111
    %v113 = vsel %vm112, %v105, 0
    %v114 = vsel %vm112, %v107, 0
    %v115 = vld [vmem:[#allocation5] sm:$0xf]
    %v116 = vld [vmem:[#allocation5 + $0x4] sm:$0xf]
    %v117 = vld [vmem:[#allocation5 + $0x8] sm:$0xf]
    %v118 = vld [vmem:[#allocation5 + $0xc] sm:$0xf]
    %v119 = vld [vmem:[#allocation5 + $0x10] sm:$0xf]
    %v120 = vld [vmem:[#allocation5 + $0x14] sm:$0xf]
    %v121 = vld [vmem:[#allocation5 + $0x18] sm:$0xf]
    %v122 = vld [vmem:[#allocation5 + $0x1c] sm:$0xf]
    %s123 = scalar_lea.vmem [#allocation5], 32
    %v124 = vld [vmem:[%s123] sm:$0xf]
    %v125 = vld [vmem:[%s123 + $0x4] sm:$0xf]
    %v126 = vld [vmem:[%s123 + $0x8] sm:$0xf]
    %v127 = vld [vmem:[%s123 + $0xc] sm:$0xf]
    %v128 = vld [vmem:[%s123 + $0x10] sm:$0xf]
    %v129 = vld [vmem:[%s123 + $0x14] sm:$0xf]
    %v130 = vld [vmem:[%s123 + $0x18] sm:$0xf]
    %v131 = vld [vmem:[%s123 + $0x1c] sm:$0xf]
    %v140 = vunpack.c.l.b16 %v124
    %v141 = vunpack.c.l.b16 %v125
    %v142 = vunpack.c.l.b16 %v126
    %v143 = vunpack.c.l.b16 %v127
    %v144 = vunpack.c.l.b16 %v128
    %v145 = vunpack.c.l.b16 %v129
    %v146 = vunpack.c.l.b16 %v130
    %v147 = vunpack.c.l.b16 %v131
    %v148 = vpack.c.b16 %v141, %v140
    %v149 = vpack.c.b16 %v143, %v142
    %v150 = vpack.c.b16 %v145, %v144
    %v151 = vpack.c.b16 %v147, %v146
    %vm156 = vcmask 523264
    %v157 = vsel %vm156, %v81, 0
    %v159 = vsel %vm156, %v82, 0
    %161 = vmatprep.subr.bf16.mxu0 0
    %162 = vmatpush1.bf16.msra.mxu0 0
    %163 = vmatprep.subr.bf16.mxu0 0
    %164 = vmatpush1.bf16.msra.mxu0 0
    %165 = vmatprep.subr.bf16.mxu0 0
    %166 = vmatpush1.bf16.msra.mxu0 0
    %167 = vmatprep.subr.bf16.mxu0 0
    %168 = vmatpush1.bf16.msra.mxu0 0
    %169 = vmatprep.subr.bf16.mxu0 0
    %170 = vmatpush1.bf16.msra.mxu0 %v151
    %171 = vmatprep.subr.bf16.mxu0 0
    %172 = vmatpush1.bf16.msra.mxu0 %v150
    %173 = vmatprep.subr.bf16.mxu0 0
    %174 = vmatpush1.bf16.msra.mxu0 %v149
    %175 = vmatprep.subr.bf16.mxu0 0
    %176 = vmatpush1.bf16.msra.mxu0 %v148
    %177 = vmatprep.subr.bf16.mxu0 0
    %178 = vmatpush2.bf16.msra.mxu0 0
    %179 = vmatprep.subr.bf16.mxu0 0
    %180 = vmatpush2.bf16.msra.mxu0 0
    %181 = vmatprep.subr.bf16.mxu0 0
    %182 = vmatpush2.bf16.msra.mxu0 0
    %183 = vmatprep.subr.bf16.mxu0 0
    %184 = vmatpush2.bf16.msra.mxu0 0
    %185 = vmatprep.subr.bf16.mxu0 0
    %186 = vmatpush2.bf16.msra.mxu0 0
    %187 = vmatprep.subr.bf16.mxu0 0
    %188 = vmatpush2.bf16.msra.mxu0 0
    %189 = vmatprep.subr.bf16.mxu0 0
    %190 = vmatpush2.bf16.msra.mxu0 0
    %191 = vmatprep.subr.bf16.mxu0 0
    %192 = vmatpush2.bf16.msra.mxu0 0
    %193 = vmatprep.mubr.bf16.mxu0 0
    %194 = vmatmul.mubr.bf16.gmra.mxu0 %v157
    %v195 = vpop.f32.mrf.mxu0
    %v196 = vadd.f32 0.0, %v195
    %v197 = vpop.f32.mrf.mxu0
    %v198 = vpop.f32.mrf.mxu0
    %v199 = vadd.f32 0.0, %v198
    %v200 = vpop.f32.mrf.mxu0
    %201 = vmatprep.mubr.bf16.mxu0 0
    %202 = vmatmul.mubr.bf16.gmra.mxu0 %v159
    %v203 = vpop.f32.mrf.mxu0
    %v204 = vadd.f32 0.0, %v203
    %v205 = vpop.f32.mrf.mxu0
    %v206 = vpop.f32.mrf.mxu0
    %v207 = vadd.f32 0.0, %v206
    %v208 = vpop.f32.mrf.mxu0
    %209 = vdwg.mxu0
    %v218 = vunpack.c.l.b16 %v115
    %v219 = vunpack.c.l.b16 %v116
    %v220 = vunpack.c.l.b16 %v117
    %v221 = vunpack.c.l.b16 %v118
    %v222 = vunpack.c.l.b16 %v119
    %v223 = vunpack.c.l.b16 %v120
    %v224 = vunpack.c.l.b16 %v121
    %v225 = vunpack.c.l.b16 %v122
    %v226 = vpack.c.b16 %v219, %v218
    %v227 = vpack.c.b16 %v221, %v220
    %v228 = vpack.c.b16 %v223, %v222
    %v229 = vpack.c.b16 %v225, %v224
    %v235 = vsel %vm156, %v102, 0
    %v238 = vsel %vm156, %v103, 0
    %240 = vmatprep.subr.bf16.mxu0 0
    %241 = vmatpush1.bf16.msra.mxu0 0
    %242 = vmatprep.subr.bf16.mxu0 0
    %243 = vmatpush1.bf16.msra.mxu0 0
    %244 = vmatprep.subr.bf16.mxu0 0
    %245 = vmatpush1.bf16.msra.mxu0 0
    %246 = vmatprep.subr.bf16.mxu0 0
    %247 = vmatpush1.bf16.msra.mxu0 0
    %248 = vmatprep.subr.bf16.mxu0 0
    %249 = vmatpush1.bf16.msra.mxu0 %v229
    %250 = vmatprep.subr.bf16.mxu0 0
    %251 = vmatpush1.bf16.msra.mxu0 %v228
    %252 = vmatprep.subr.bf16.mxu0 0
    %253 = vmatpush1.bf16.msra.mxu0 %v227
    %254 = vmatprep.subr.bf16.mxu0 0
    %255 = vmatpush1.bf16.msra.mxu0 %v226
    %256 = vmatprep.subr.bf16.mxu0 0
    %257 = vmatpush2.bf16.msra.mxu0 0
    %258 = vmatprep.subr.bf16.mxu0 0
    %259 = vmatpush2.bf16.msra.mxu0 0
    %260 = vmatprep.subr.bf16.mxu0 0
    %261 = vmatpush2.bf16.msra.mxu0 0
    %262 = vmatprep.subr.bf16.mxu0 0
    %263 = vmatpush2.bf16.msra.mxu0 0
    %264 = vmatprep.subr.bf16.mxu0 0
    %265 = vmatpush2.bf16.msra.mxu0 0
    %266 = vmatprep.subr.bf16.mxu0 0
    %267 = vmatpush2.bf16.msra.mxu0 0
    %268 = vmatprep.subr.bf16.mxu0 0
    %269 = vmatpush2.bf16.msra.mxu0 0
    %270 = vmatprep.subr.bf16.mxu0 0
    %271 = vmatpush2.bf16.msra.mxu0 0
    %272 = vmatprep.mubr.bf16.mxu0 0
    %273 = vmatmul.mubr.bf16.gmra.mxu0 %v235
    %v274 = vpop.f32.mrf.mxu0
    %v275 = vadd.f32 %v196, %v274
    %v276 = vpop.f32.mrf.mxu0
    %v277 = vpop.f32.mrf.mxu0
    %v278 = vadd.f32 %v199, %v277
    %v279 = vpop.f32.mrf.mxu0
    %280 = vmatprep.mubr.bf16.mxu0 0
    %281 = vmatmul.mubr.bf16.gmra.mxu0 %v238
    %v282 = vpop.f32.mrf.mxu0
    %v283 = vadd.f32 %v204, %v282
    %v284 = vpop.f32.mrf.mxu0
    %v285 = vpop.f32.mrf.mxu0
    %v286 = vadd.f32 %v207, %v285
    %v287 = vpop.f32.mrf.mxu0
    %288 = vdwg.mxu0
    %s289 = scalar_lea.vmem [#allocation5], 64
    %v290 = vld [vmem:[%s289] sm:$0xf]
    %v291 = vld [vmem:[%s289 + $0x4] sm:$0xf]
    %v292 = vld [vmem:[%s289 + $0x8] sm:$0xf]
    %v293 = vld [vmem:[%s289 + $0xc] sm:$0xf]
    %v294 = vld [vmem:[%s289 + $0x10] sm:$0xf]
    %v295 = vld [vmem:[%s289 + $0x14] sm:$0xf]
    %v296 = vld [vmem:[%s289 + $0x18] sm:$0xf]
    %v297 = vld [vmem:[%s289 + $0x1c] sm:$0xf]
    %v306 = vunpack.c.l.b16 %v290
    %v307 = vunpack.c.l.b16 %v291
    %v308 = vunpack.c.l.b16 %v292
    %v309 = vunpack.c.l.b16 %v293
    %v310 = vunpack.c.l.b16 %v294
    %v311 = vunpack.c.l.b16 %v295
    %v312 = vunpack.c.l.b16 %v296
    %v313 = vunpack.c.l.b16 %v297
    %v314 = vpack.c.b16 %v307, %v306
    %v315 = vpack.c.b16 %v309, %v308
    %v316 = vpack.c.b16 %v311, %v310
    %v317 = vpack.c.b16 %v313, %v312
    %v323 = vsel %vm156, %v113, 0
    %v326 = vsel %vm156, %v114, 0
    %328 = vmatprep.subr.bf16.mxu0 0
    %329 = vmatpush1.bf16.msra.mxu0 0
    %330 = vmatprep.subr.bf16.mxu0 0
    %331 = vmatpush1.bf16.msra.mxu0 0
    %332 = vmatprep.subr.bf16.mxu0 0
    %333 = vmatpush1.bf16.msra.mxu0 0
    %334 = vmatprep.subr.bf16.mxu0 0
    %335 = vmatpush1.bf16.msra.mxu0 0
    %336 = vmatprep.subr.bf16.mxu0 0
    %337 = vmatpush1.bf16.msra.mxu0 %v317
    %338 = vmatprep.subr.bf16.mxu0 0
    %339 = vmatpush1.bf16.msra.mxu0 %v316
    %340 = vmatprep.subr.bf16.mxu0 0
    %341 = vmatpush1.bf16.msra.mxu0 %v315
    %342 = vmatprep.subr.bf16.mxu0 0
    %343 = vmatpush1.bf16.msra.mxu0 %v314
    %344 = vmatprep.subr.bf16.mxu0 0
    %345 = vmatpush2.bf16.msra.mxu0 0
    %346 = vmatprep.subr.bf16.mxu0 0
    %347 = vmatpush2.bf16.msra.mxu0 0
    %348 = vmatprep.subr.bf16.mxu0 0
    %349 = vmatpush2.bf16.msra.mxu0 0
    %350 = vmatprep.subr.bf16.mxu0 0
    %351 = vmatpush2.bf16.msra.mxu0 0
    %352 = vmatprep.subr.bf16.mxu0 0
    %353 = vmatpush2.bf16.msra.mxu0 0
    %354 = vmatprep.subr.bf16.mxu0 0
    %355 = vmatpush2.bf16.msra.mxu0 0
    %356 = vmatprep.subr.bf16.mxu0 0
    %357 = vmatpush2.bf16.msra.mxu0 0
    %358 = vmatprep.subr.bf16.mxu0 0
    %359 = vmatpush2.bf16.msra.mxu0 0
    %360 = vmatprep.mubr.bf16.mxu0 0
    %361 = vmatmul.mubr.bf16.gmra.mxu0 %v323
    %v362 = vpop.f32.mrf.mxu0
    %v363 = vadd.f32 0.0, %v362
    %v364 = vpop.f32.mrf.mxu0
    %v365 = vpop.f32.mrf.mxu0
    %v366 = vadd.f32 0.0, %v365
    %v367 = vpop.f32.mrf.mxu0
    %368 = vmatprep.mubr.bf16.mxu0 0
    %369 = vmatmul.mubr.bf16.gmra.mxu0 %v326
    %v370 = vpop.f32.mrf.mxu0
    %v371 = vadd.f32 0.0, %v370
    %v372 = vpop.f32.mrf.mxu0
    %v373 = vpop.f32.mrf.mxu0
    %v374 = vadd.f32 0.0, %v373
    %v375 = vpop.f32.mrf.mxu0
    %376 = vdwg.mxu0
    %v377 = vadd.f32 %v275, %v363
    %v378 = vadd.f32 %v278, %v366
    %v379 = vadd.f32 %v283, %v371
    %v380 = vadd.f32 %v286, %v374
    %v381 = vld [vmem:[%s2] sm:$0x1]
    %v383 = vlaneseq
    %v384 = vshrl.u32 %v383, 7
    %v385 = vsub.s32 0, %v384
    %v386 = vrot.slane %v381, %v385
    %v388 = vmul.f32 %v377, %v386
    %v389 = vmul.f32 %v378, %v386
    %v390 = vmul.f32 %v379, %v386
    %v391 = vmul.f32 %v380, %v386
    %v392 = vld [vmem:[%s3] sm:$0x1]
    %v394 = vlaneseq
    %v395 = vshrl.u32 %v394, 7
    %v396 = vsub.s32 0, %v395
    %v397 = vrot.slane %v392, %v396
    %v399 = vadd.f32 %v388, %v397
    %v400 = vadd.f32 %v389, %v397
    %v401 = vadd.f32 %v390, %v397
    %v402 = vadd.f32 %v391, %v397
    %v403 = vmax.f32 %v399, 0.0
    %v404 = vmax.f32 %v400, 0.0
    %v405 = vmax.f32 %v401, 0.0
    %v406 = vmax.f32 %v402, 0.0
    %v407 = vpack.c.bf16 %v404, %v403
    %v408 = vpack.c.bf16 %v406, %v405
    %v410 = vshrl.u32 %v407, 16
    %v412 = vrot.slane %v410, 7
    %v413 = vshll.u32 %v407, 16
    %v415 = vor.u32 %v412, %v413
    %v417 = vshrl.u32 %v408, 16
    %v419 = vrot.slane %v417, 7
    %v420 = vshll.u32 %v408, 16
    %v422 = vor.u32 %v419, %v420
    %v425 = vsel %vm101, 0, %v415
    %v426 = vsel %vm101, 0, %v422
    %v427 = vrot.slane %v413, 1
    %v428 = vor.u32 %v410, %v427
    %v429 = vrot.slane %v420, 1
    %v430 = vor.u32 %v417, %v429
    %v433 = vsel %vm112, %v428, 0
    %v434 = vsel %vm112, %v430, 0
    %v435 = vld [vmem:[#allocation7] sm:$0xf]
    %v436 = vld [vmem:[#allocation7 + $0x4] sm:$0xf]
    %v437 = vld [vmem:[#allocation7 + $0x8] sm:$0xf]
    %v438 = vld [vmem:[#allocation7 + $0xc] sm:$0xf]
    %v439 = vld [vmem:[#allocation7 + $0x10] sm:$0xf]
    %v440 = vld [vmem:[#allocation7 + $0x14] sm:$0xf]
    %v441 = vld [vmem:[#allocation7 + $0x18] sm:$0xf]
    %v442 = vld [vmem:[#allocation7 + $0x1c] sm:$0xf]
    %v443 = vld [vmem:[#allocation7 + $0x20] sm:$0xf]
    %v444 = vld [vmem:[#allocation7 + $0x24] sm:$0xf]
    %v445 = vld [vmem:[#allocation7 + $0x28] sm:$0xf]
    %v446 = vld [vmem:[#allocation7 + $0x2c] sm:$0xf]
    %v447 = vld [vmem:[#allocation7 + $0x30] sm:$0xf]
    %v448 = vld [vmem:[#allocation7 + $0x34] sm:$0xf]
    %v449 = vld [vmem:[#allocation7 + $0x38] sm:$0xf]
    %v450 = vld [vmem:[#allocation7 + $0x3c] sm:$0xf]
    %s451 = scalar_lea.vmem [#allocation7], 64
    %v452 = vld [vmem:[%s451] sm:$0xf]
    %v453 = vld [vmem:[%s451 + $0x4] sm:$0xf]
    %v454 = vld [vmem:[%s451 + $0x8] sm:$0xf]
    %v455 = vld [vmem:[%s451 + $0xc] sm:$0xf]
    %v456 = vld [vmem:[%s451 + $0x10] sm:$0xf]
    %v457 = vld [vmem:[%s451 + $0x14] sm:$0xf]
    %v458 = vld [vmem:[%s451 + $0x18] sm:$0xf]
    %v459 = vld [vmem:[%s451 + $0x1c] sm:$0xf]
    %v460 = vld [vmem:[%s451 + $0x20] sm:$0xf]
    %v461 = vld [vmem:[%s451 + $0x24] sm:$0xf]
    %v462 = vld [vmem:[%s451 + $0x28] sm:$0xf]
    %v463 = vld [vmem:[%s451 + $0x2c] sm:$0xf]
    %v464 = vld [vmem:[%s451 + $0x30] sm:$0xf]
    %v465 = vld [vmem:[%s451 + $0x34] sm:$0xf]
    %v466 = vld [vmem:[%s451 + $0x38] sm:$0xf]
    %v467 = vld [vmem:[%s451 + $0x3c] sm:$0xf]
    %v484 = vunpack.c.l.b16 %v452
    %v485 = vunpack.c.l.b16 %v453
    %v486 = vunpack.c.l.b16 %v454
    %v487 = vunpack.c.l.b16 %v455
    %v488 = vunpack.c.l.b16 %v456
    %v489 = vunpack.c.l.b16 %v457
    %v490 = vunpack.c.l.b16 %v458
    %v491 = vunpack.c.l.b16 %v459
    %v492 = vunpack.c.l.b16 %v460
    %v493 = vunpack.c.l.b16 %v461
    %v494 = vunpack.c.l.b16 %v462
    %v495 = vunpack.c.l.b16 %v463
    %v496 = vunpack.c.l.b16 %v464
    %v497 = vunpack.c.l.b16 %v465
    %v498 = vunpack.c.l.b16 %v466
    %v499 = vunpack.c.l.b16 %v467
    %v500 = vpack.c.b16 %v485, %v484
    %v501 = vpack.c.b16 %v487, %v486
    %v502 = vpack.c.b16 %v489, %v488
    %v503 = vpack.c.b16 %v491, %v490
    %v504 = vpack.c.b16 %v493, %v492
    %v505 = vpack.c.b16 %v495, %v494
    %v506 = vpack.c.b16 %v497, %v496
    %v507 = vpack.c.b16 %v499, %v498
    %516 = vmatprep.subr.bf16.mxu0 0
    %517 = vmatpush1.bf16.msra.mxu0 %v507
    %518 = vmatprep.subr.bf16.mxu0 0
    %519 = vmatpush1.bf16.msra.mxu0 %v506
    %520 = vmatprep.subr.bf16.mxu0 0
    %521 = vmatpush1.bf16.msra.mxu0 %v505
    %522 = vmatprep.subr.bf16.mxu0 0
    %523 = vmatpush1.bf16.msra.mxu0 %v504
    %524 = vmatprep.subr.bf16.mxu0 0
    %525 = vmatpush1.bf16.msra.mxu0 %v503
    %526 = vmatprep.subr.bf16.mxu0 0
    %527 = vmatpush1.bf16.msra.mxu0 %v502
    %528 = vmatprep.subr.bf16.mxu0 0
    %529 = vmatpush1.bf16.msra.mxu0 %v501
    %530 = vmatprep.subr.bf16.mxu0 0
    %531 = vmatpush1.bf16.msra.mxu0 %v500
    %532 = vmatprep.subr.bf16.mxu0 0
    %533 = vmatpush2.bf16.msra.mxu0 0
    %534 = vmatprep.subr.bf16.mxu0 0
    %535 = vmatpush2.bf16.msra.mxu0 0
    %536 = vmatprep.subr.bf16.mxu0 0
    %537 = vmatpush2.bf16.msra.mxu0 0
    %538 = vmatprep.subr.bf16.mxu0 0
    %539 = vmatpush2.bf16.msra.mxu0 0
    %540 = vmatprep.subr.bf16.mxu0 0
    %541 = vmatpush2.bf16.msra.mxu0 0
    %542 = vmatprep.subr.bf16.mxu0 0
    %543 = vmatpush2.bf16.msra.mxu0 0
    %544 = vmatprep.subr.bf16.mxu0 0
    %545 = vmatpush2.bf16.msra.mxu0 0
    %546 = vmatprep.subr.bf16.mxu0 0
    %547 = vmatpush2.bf16.msra.mxu0 0
    %548 = vmatprep.mubr.bf16.mxu0 0
    %549 = vmatmul.mubr.bf16.gmra.mxu0 %v407
    %v550 = vpop.f32.mrf.mxu0
    %v551 = vadd.f32 0.0, %v550
    %v552 = vpop.f32.mrf.mxu0
    %v553 = vpop.f32.mrf.mxu0
    %v554 = vadd.f32 0.0, %v553
    %v555 = vpop.f32.mrf.mxu0
    %556 = vmatprep.mubr.bf16.mxu0 0
    %557 = vmatmul.mubr.bf16.gmra.mxu0 %v408
    %v558 = vpop.f32.mrf.mxu0
    %v559 = vadd.f32 0.0, %v558
    %v560 = vpop.f32.mrf.mxu0
    %v561 = vpop.f32.mrf.mxu0
    %v562 = vadd.f32 0.0, %v561
    %v563 = vpop.f32.mrf.mxu0
    %564 = vdwg.mxu0
    %v581 = vunpack.c.l.b16 %v435
    %v582 = vunpack.c.l.b16 %v436
    %v583 = vunpack.c.l.b16 %v437
    %v584 = vunpack.c.l.b16 %v438
    %v585 = vunpack.c.l.b16 %v439
    %v586 = vunpack.c.l.b16 %v440
    %v587 = vunpack.c.l.b16 %v441
    %v588 = vunpack.c.l.b16 %v442
    %v589 = vunpack.c.l.b16 %v443
    %v590 = vunpack.c.l.b16 %v444
    %v591 = vunpack.c.l.b16 %v445
    %v592 = vunpack.c.l.b16 %v446
    %v593 = vunpack.c.l.b16 %v447
    %v594 = vunpack.c.l.b16 %v448
    %v595 = vunpack.c.l.b16 %v449
    %v596 = vunpack.c.l.b16 %v450
    %v597 = vpack.c.b16 %v582, %v581
    %v598 = vpack.c.b16 %v584, %v583
    %v599 = vpack.c.b16 %v586, %v585
    %v600 = vpack.c.b16 %v588, %v587
    %v601 = vpack.c.b16 %v590, %v589
    %v602 = vpack.c.b16 %v592, %v591
    %v603 = vpack.c.b16 %v594, %v593
    %v604 = vpack.c.b16 %v596, %v595
    %613 = vmatprep.subr.bf16.mxu0 0
    %614 = vmatpush1.bf16.msra.mxu0 %v604
    %615 = vmatprep.subr.bf16.mxu0 0
    %616 = vmatpush1.bf16.msra.mxu0 %v603
    %617 = vmatprep.subr.bf16.mxu0 0
    %618 = vmatpush1.bf16.msra.mxu0 %v602
    %619 = vmatprep.subr.bf16.mxu0 0
    %620 = vmatpush1.bf16.msra.mxu0 %v601
    %621 = vmatprep.subr.bf16.mxu0 0
    %622 = vmatpush1.bf16.msra.mxu0 %v600
    %623 = vmatprep.subr.bf16.mxu0 0
    %624 = vmatpush1.bf16.msra.mxu0 %v599
    %625 = vmatprep.subr.bf16.mxu0 0
    %626 = vmatpush1.bf16.msra.mxu0 %v598
    %627 = vmatprep.subr.bf16.mxu0 0
    %628 = vmatpush1.bf16.msra.mxu0 %v597
    %629 = vmatprep.subr.bf16.mxu0 0
    %630 = vmatpush2.bf16.msra.mxu0 0
    %631 = vmatprep.subr.bf16.mxu0 0
    %632 = vmatpush2.bf16.msra.mxu0 0
    %633 = vmatprep.subr.bf16.mxu0 0
    %634 = vmatpush2.bf16.msra.mxu0 0
    %635 = vmatprep.subr.bf16.mxu0 0
    %636 = vmatpush2.bf16.msra.mxu0 0
    %637 = vmatprep.subr.bf16.mxu0 0
    %638 = vmatpush2.bf16.msra.mxu0 0
    %639 = vmatprep.subr.bf16.mxu0 0
    %640 = vmatpush2.bf16.msra.mxu0 0
    %641 = vmatprep.subr.bf16.mxu0 0
    %642 = vmatpush2.bf16.msra.mxu0 0
    %643 = vmatprep.subr.bf16.mxu0 0
    %644 = vmatpush2.bf16.msra.mxu0 0
    %645 = vmatprep.mubr.bf16.mxu0 0
    %646 = vmatmul.mubr.bf16.gmra.mxu0 %v425
    %v647 = vpop.f32.mrf.mxu0
    %v648 = vadd.f32 %v551, %v647
    %v649 = vpop.f32.mrf.mxu0
    %v650 = vpop.f32.mrf.mxu0
    %v651 = vadd.f32 %v554, %v650
    %v652 = vpop.f32.mrf.mxu0
    %653 = vmatprep.mubr.bf16.mxu0 0
    %654 = vmatmul.mubr.bf16.gmra.mxu0 %v426
    %v655 = vpop.f32.mrf.mxu0
    %v656 = vadd.f32 %v559, %v655
    %v657 = vpop.f32.mrf.mxu0
    %v658 = vpop.f32.mrf.mxu0
    %v659 = vadd.f32 %v562, %v658
    %v660 = vpop.f32.mrf.mxu0
    %661 = vdwg.mxu0
    %s662 = scalar_lea.vmem [#allocation7], 128
    %v663 = vld [vmem:[%s662] sm:$0xf]
    %v664 = vld [vmem:[%s662 + $0x4] sm:$0xf]
    %v665 = vld [vmem:[%s662 + $0x8] sm:$0xf]
    %v666 = vld [vmem:[%s662 + $0xc] sm:$0xf]
    %v667 = vld [vmem:[%s662 + $0x10] sm:$0xf]
    %v668 = vld [vmem:[%s662 + $0x14] sm:$0xf]
    %v669 = vld [vmem:[%s662 + $0x18] sm:$0xf]
    %v670 = vld [vmem:[%s662 + $0x1c] sm:$0xf]
    %v671 = vld [vmem:[%s662 + $0x20] sm:$0xf]
    %v672 = vld [vmem:[%s662 + $0x24] sm:$0xf]
    %v673 = vld [vmem:[%s662 + $0x28] sm:$0xf]
    %v674 = vld [vmem:[%s662 + $0x2c] sm:$0xf]
    %v675 = vld [vmem:[%s662 + $0x30] sm:$0xf]
    %v676 = vld [vmem:[%s662 + $0x34] sm:$0xf]
    %v677 = vld [vmem:[%s662 + $0x38] sm:$0xf]
    %v678 = vld [vmem:[%s662 + $0x3c] sm:$0xf]
    %v695 = vunpack.c.l.b16 %v663
    %v696 = vunpack.c.l.b16 %v664
    %v697 = vunpack.c.l.b16 %v665
    %v698 = vunpack.c.l.b16 %v666
    %v699 = vunpack.c.l.b16 %v667
    %v700 = vunpack.c.l.b16 %v668
    %v701 = vunpack.c.l.b16 %v669
    %v702 = vunpack.c.l.b16 %v670
    %v703 = vunpack.c.l.b16 %v671
    %v704 = vunpack.c.l.b16 %v672
    %v705 = vunpack.c.l.b16 %v673
    %v706 = vunpack.c.l.b16 %v674
    %v707 = vunpack.c.l.b16 %v675
    %v708 = vunpack.c.l.b16 %v676
    %v709 = vunpack.c.l.b16 %v677
    %v710 = vunpack.c.l.b16 %v678
    %v711 = vpack.c.b16 %v696, %v695
    %v712 = vpack.c.b16 %v698, %v697
    %v713 = vpack.c.b16 %v700, %v699
    %v714 = vpack.c.b16 %v702, %v701
    %v715 = vpack.c.b16 %v704, %v703
    %v716 = vpack.c.b16 %v706, %v705
    %v717 = vpack.c.b16 %v708, %v707
    %v718 = vpack.c.b16 %v710, %v709
    %727 = vmatprep.subr.bf16.mxu0 0
    %728 = vmatpush1.bf16.msra.mxu0 %v718
    %729 = vmatprep.subr.bf16.mxu0 0
    %730 = vmatpush1.bf16.msra.mxu0 %v717
    %731 = vmatprep.subr.bf16.mxu0 0
    %732 = vmatpush1.bf16.msra.mxu0 %v716
    %733 = vmatprep.subr.bf16.mxu0 0
    %734 = vmatpush1.bf16.msra.mxu0 %v715
    %735 = vmatprep.subr.bf16.mxu0 0
    %736 = vmatpush1.bf16.msra.mxu0 %v714
    %737 = vmatprep.subr.bf16.mxu0 0
    %738 = vmatpush1.bf16.msra.mxu0 %v713
    %739 = vmatprep.subr.bf16.mxu0 0
    %740 = vmatpush1.bf16.msra.mxu0 %v712
    %741 = vmatprep.subr.bf16.mxu0 0
    %742 = vmatpush1.bf16.msra.mxu0 %v711
    %743 = vmatprep.subr.bf16.mxu0 0
    %744 = vmatpush2.bf16.msra.mxu0 0
    %745 = vmatprep.subr.bf16.mxu0 0
    %746 = vmatpush2.bf16.msra.mxu0 0
    %747 = vmatprep.subr.bf16.mxu0 0
    %748 = vmatpush2.bf16.msra.mxu0 0
    %749 = vmatprep.subr.bf16.mxu0 0
    %750 = vmatpush2.bf16.msra.mxu0 0
    %751 = vmatprep.subr.bf16.mxu0 0
    %752 = vmatpush2.bf16.msra.mxu0 0
    %753 = vmatprep.subr.bf16.mxu0 0
    %754 = vmatpush2.bf16.msra.mxu0 0
    %755 = vmatprep.subr.bf16.mxu0 0
    %756 = vmatpush2.bf16.msra.mxu0 0
    %757 = vmatprep.subr.bf16.mxu0 0
    %758 = vmatpush2.bf16.msra.mxu0 0
    %759 = vmatprep.mubr.bf16.mxu0 0
    %760 = vmatmul.mubr.bf16.gmra.mxu0 %v433
    %v761 = vpop.f32.mrf.mxu0
    %v762 = vadd.f32 0.0, %v761
    %v763 = vpop.f32.mrf.mxu0
    %v764 = vpop.f32.mrf.mxu0
    %v765 = vadd.f32 0.0, %v764
    %v766 = vpop.f32.mrf.mxu0
    %767 = vmatprep.mubr.bf16.mxu0 0
    %768 = vmatmul.mubr.bf16.gmra.mxu0 %v434
    %v769 = vpop.f32.mrf.mxu0
    %v770 = vadd.f32 0.0, %v769
    %v771 = vpop.f32.mrf.mxu0
    %v772 = vpop.f32.mrf.mxu0
    %v773 = vadd.f32 0.0, %v772
    %v774 = vpop.f32.mrf.mxu0
    %775 = vdwg.mxu0
    %v776 = vadd.f32 %v648, %v762
    %v777 = vadd.f32 %v651, %v765
    %v778 = vadd.f32 %v656, %v770
    %v779 = vadd.f32 %v659, %v773
    %v780 = vld [vmem:[%s5] sm:$0x1]
    %v782 = vlaneseq
    %v783 = vshrl.u32 %v782, 7
    %v784 = vsub.s32 0, %v783
    %v785 = vrot.slane %v780, %v784
    %v787 = vmul.f32 %v776, %v785
    %v788 = vmul.f32 %v777, %v785
    %v789 = vmul.f32 %v778, %v785
    %v790 = vmul.f32 %v779, %v785
    %v791 = vld [vmem:[%s6] sm:$0x1]
    %v793 = vlaneseq
    %v794 = vshrl.u32 %v793, 7
    %v795 = vsub.s32 0, %v794
    %v796 = vrot.slane %v791, %v795
    %v798 = vadd.f32 %v787, %v796
    %v799 = vadd.f32 %v788, %v796
    %v800 = vadd.f32 %v789, %v796
    %v801 = vadd.f32 %v790, %v796
    %v802 = vmax.f32 %v798, 0.0
    %v803 = vmax.f32 %v799, 0.0
    %v804 = vmax.f32 %v800, 0.0
    %v805 = vmax.f32 %v801, 0.0
    %806 = vst [vmem:[#allocation8] sm:$0xff] %v802
    %807 = vst [vmem:[#allocation8 + $0x8] sm:$0xff] %v803
    %808 = vst [vmem:[#allocation8 + $0x10] sm:$0xff] %v804
    %809 = vst [vmem:[#allocation8 + $0x18] sm:$0xff] %v805
    // Predicated region
    $region42: #{tpu_custom_call.1} parent=1 // pred_check
      _
    $region43: #{tpu_custom_call.1} parent=1 // pred_check_branch
      %811 = sbr.rel (0) target = $region45
    $region44: #{tpu_custom_call.1} parent=1 // pred_region
      %s813 = ssub.s32 512, 512
      %814 = vsyncadd [#allocation4], %s813
      %s815 = sshll.u32 [#allocation8], 4
      %s816 = int_to_ptr.vmem [resolvable:$true] %s815
      %821 = dma.vmem_to_hbm [thread:$0]  %s816, 512, %s7, [#allocation4], 128, 128, 8
    $region45: #{tpu_custom_call.1} parent=1 // pred_fallthru
      _
    // Predicated region
    $region46: #{tpu_custom_call.1} parent=1 // pred_check
      _
    $region47: #{tpu_custom_call.1} parent=1 // pred_check_branch
      %823 = sbr.rel (0) target = $region49
    $region48: #{tpu_custom_call.1} parent=1 // pred_region
      %824 = dma.done [#allocation4], 512
    $region49: #{tpu_custom_call.1} parent=1 // pred_fallthru
      _
    %825 = vsyncpa [#allocation3], 1
    %826 = vsyncpa [#allocation6], 1
    %827 = vsyncpa [#allocation4], 1

</llo_original>
